<compile_context>
chip_gen: v6e
topology: v6e:2x2x1
jax: 0.10.0
libtpu: 0.0.40
codegen_flags: <defaults>
</compile_context>

<pallas_src>
import jax
import jax.numpy as jnp
from jax.experimental import pallas as pl
from jax.experimental.pallas import tpu as pltpu

_MIB = 1024 * 1024


def attention_kernel(dec_ref, enc_ref, w_dec_ref, w_enc_ref, b_ref, out_ref):
    # dec_ref:   [TB, dec_hid]   bf16
    # enc_ref:   [S, TB, F]      bf16, seq-first block, F = 2*enc_hid
    # w_dec_ref: [dec_hid, A]    bf16
    # w_enc_ref: [F, A]          bf16
    # b_ref:     [1, A]          f32
    # out_ref:   [TB, S_pad]     f32, S_pad = round_up(S, 128) -> lane-dense store
    S, TB, F = enc_ref.shape
    A = w_enc_ref.shape[-1]
    S_pad = out_ref.shape[-1]

    # One flattened 2-D matmul on the MXU (bf16 inputs, f32 accumulate); M = S*TB rows.
    enc2d = enc_ref[...].reshape(S * TB, F)
    e_enc = jnp.dot(enc2d, w_enc_ref[...],
                    preferred_element_type=jnp.float32)            # [S*TB, A]

    # Decoder contribution computed once per batch row; fuse the bias into it so the
    # broadcast over src_len is a single VALU add on the hot S*TB*A region.
    e_dec = jnp.dot(dec_ref[...], w_dec_ref[...],
                    preferred_element_type=jnp.float32)            # [TB, A]
    dec_bias = e_dec + b_ref[...]                                  # [TB, A]

    energy = jnp.tanh(e_enc.reshape(S, TB, A) + dec_bias[None, :, :])   # [S, TB, A] f32

    att = jnp.sum(energy, axis=-1)      # [S, TB]   sum over attn_dim (XLU reduce)
    att = att.T                         # [TB, S]   src_len on the lane axis (XLU)

    # Numerically stable softmax over src_len (PyTorch dim=1).  Exact divide: it is off
    # the hot path and makes rows sum to 1 up to f32 rounding.
    m = jnp.max(att, axis=-1, keepdims=True)
    e = jnp.exp(att - m)
    denom = jnp.sum(e, axis=-1, keepdims=True)
    soft = e / denom                    # [TB, S]

    if S_pad > S:  # static: pad lanes so the final store is unmasked / lane-dense
        soft = jnp.concatenate(
            [soft, jnp.zeros((TB, S_pad - S), soft.dtype)], axis=-1)
    out_ref[...] = soft.astype(out_ref.dtype)


def _vmem_plan():
    """Generation-aware (tile_budget_bytes, vmem_limit_bytes, min_grid_steps)."""
    try:
        cap = int(pltpu.get_tpu_info().vmem_capacity_bytes)
    except Exception:
        cap = 64 * _MIB  # conservative fallback (v7x-sized VMEM)
    if cap >= 128 * _MIB:
        # v5e / v6e: 128 MiB physical VMEM -> big blocks amortize per-step overhead.
        return 64 * _MIB, 96 * _MIB, 4
    # v7x: 64 MiB per TensorCore; keep the limit <= ~48 MiB and keep >= 4 grid steps so
    # the 'parallel' batch axis can be split across both TensorCores.
    return 28 * _MIB, 48 * _MIB, 4


def _choose_batch_tile(batch, src_len, s_pad, enc_feat, dec_hid, attn_dim,
                       budget_bytes, min_grid, enc_buffers=2):
    """Largest batch tile (multiple of 8 dividing `batch`) whose pipelined buffers plus
    in-kernel temporaries fit the VMEM budget, keeping >= min_grid grid steps when the
    batch is large enough.  `batch` must already be a multiple of 8."""
    # Per-batch-row VMEM bytes:
    #   enc block   (bf16, enc_buffers-deep pipeline):  enc_buffers * src_len * enc_feat * 2
    #   dec block   (bf16, double-buffered):            2 * dec_hid * 2
    #   out block   (f32,  double-buffered, lane-padded): 2 * s_pad * 4
    #   f32 temporaries (e_enc + energy):               2 * src_len * attn_dim * 4
    #   softmax temporaries (att / exp / padded soft):  4 * s_pad * 4
    bytes_per_row = (enc_buffers * src_len * enc_feat * 2
                     + 2 * dec_hid * 2
                     + 2 * s_pad * 4
                     + 2 * src_len * attn_dim * 4
                     + 4 * s_pad * 4)
    # Grid-resident weight blocks (double-buffered): w_dec, w_enc (bf16), bias (f32).
    fixed = 2 * ((dec_hid + enc_feat) * attn_dim * 2 + attn_dim * 4)
    avail = max(budget_bytes - fixed, 0)

    cap = max(8, (avail // bytes_per_row) // 8 * 8)
    if batch >= 8 * min_grid:
        # Keep the pipeline busy / both TensorCores fed.
        cap = min(cap, (batch // min_grid) // 8 * 8)
    tb = min(batch, cap)
    tb = max(8, tb - tb % 8)
    while batch % tb != 0:
        tb -= 8
    return tb


def attention_forward(decoder_hidden, encoder_outputs, w_dec, w_enc, b,
                      *, batch_tile=None, enc_buffers=2):
    """decoder_hidden: [B, dec_hid], encoder_outputs: [S, B, 2*enc_hid] (seq-first,
    ideally already bf16), w_dec: [dec_hid, attn_dim], w_enc: [2*enc_hid, attn_dim],
    b: [1, attn_dim].  Returns softmax attention [B, S] in f32."""
    S, B, F = encoder_outputs.shape
    dec_hid = decoder_hidden.shape[-1]
    A = w_enc.shape[-1]

    # MXU operands in bf16 (f32 accumulation).  If the caller already stores them in
    # bf16 (recommended: halves the dominant HBM read) these casts are no-ops.
    dec = decoder_hidden.astype(jnp.bfloat16)
    enc = encoder_outputs.astype(jnp.bfloat16)
    w_dec = w_dec.astype(jnp.bfloat16)
    w_enc = w_enc.astype(jnp.bfloat16)
    b = b.astype(jnp.float32)

    # Pad batch up to a multiple of 8 (sublane requirement); padded rows sliced off.
    B_pad = -(-B // 8) * 8
    if B_pad != B:
        dec = jnp.pad(dec, ((0, B_pad - B), (0, 0)))
        enc = jnp.pad(enc, ((0, 0), (0, B_pad - B), (0, 0)))

    # Lane-dense output: pad src_len up to a multiple of 128 (sliced off below).
    S_pad = -(-S // 128) * 128

    budget, vmem_limit, min_grid = _vmem_plan()
    tb = batch_tile if batch_tile is not None else _choose_batch_tile(
        B_pad, S, S_pad, F, dec_hid, A, budget, min_grid, enc_buffers)
    assert B_pad % tb == 0 and tb % 8 == 0, "invalid batch tile"
    grid = (B_pad // tb,)

    # Encoder stays seq-first in HBM; the batch axis is blocked directly (no transpose).
    if enc_buffers == 2:
        enc_spec = pl.BlockSpec((S, tb, F), lambda i: (0, i, 0))
    else:
        enc_spec = pl.BlockSpec((S, tb, F), lambda i: (0, i, 0),
                                pipeline_mode=pl.Buffered(enc_buffers))

    out = pl.pallas_call(
        attention_kernel,
        out_shape=jax.ShapeDtypeStruct((B_pad, S_pad), jnp.float32),
        grid_spec=pltpu.PrefetchScalarGridSpec(
            num_scalar_prefetch=0,
            grid=grid,
            in_specs=[
                pl.BlockSpec((tb, dec_hid), lambda i: (i, 0)),   # decoder_hidden (bf16)
                enc_spec,                                        # encoder_outputs (bf16)
                pl.BlockSpec((dec_hid, A), lambda i: (0, 0)),    # w_dec (resident)
                pl.BlockSpec((F, A), lambda i: (0, 0)),          # w_enc (resident)
                pl.BlockSpec((1, A), lambda i: (0, 0)),          # bias
            ],
            out_specs=pl.BlockSpec((tb, S_pad), lambda i: (i, 0)),
        ),
        compiler_params=pltpu.CompilerParams(
            dimension_semantics=("parallel",),          # batch axis -> both TCs on v7x
            vmem_limit_bytes=vmem_limit,
        ),
    )(dec, enc, w_dec, w_enc, b)

    return out[:B, :S]


def reference_forward(decoder_hidden, encoder_outputs, w_t, b):
    """Pure-JAX f32 reference mirroring the PyTorch forward exactly."""
    S = encoder_outputs.shape[0]
    rep = jnp.repeat(decoder_hidden[:, None, :], S, axis=1)
    enc = jnp.transpose(encoder_outputs, (1, 0, 2))
    energy = jnp.tanh(jnp.concatenate([rep, enc], axis=-1) @ w_t + b[0])
    att = jnp.sum(energy, axis=2)
    return jax.nn.softmax(att, axis=1)


if __name__ == "__main__":
    # Small shapes consistent with the module.
    enc_hid_dim, dec_hid_dim, attn_dim = 32, 32, 16
    batch, src_len = 16, 8
    attn_in = enc_hid_dim * 2 + dec_hid_dim

    key = jax.random.PRNGKey(0)
    k1, k2, k3, k4 = jax.random.split(key, 4)

    # nn.Linear(attn_in, attn_dim): weight [attn_dim, attn_in], bias [attn_dim].
    bound = 1.0 / (attn_in ** 0.5)
    w = jax.random.uniform(k1, (attn_dim, attn_in), jnp.float32, -bound, bound)
    b = jax.random.uniform(k2, (attn_dim,), jnp.float32, -bound, bound)
    w_t = jnp.transpose(w)                   # [attn_in, attn_dim]
    # cat order in the module is (decoder_hidden, encoder_outputs) along features.
    w_dec = w_t[:dec_hid_dim]                # [dec_hid, attn_dim]
    w_enc = w_t[dec_hid_dim:]                # [2*enc_hid, attn_dim]
    b2d = b[None, :]                         # [1, attn_dim]

    decoder_hidden = jax.random.normal(k3, (batch, dec_hid_dim), jnp.float32)
    encoder_outputs = jax.random.normal(k4, (src_len, batch, enc_hid_dim * 2), jnp.float32)

    # batch_tile=8 -> grid=(2,) so the blocked/pipelined path is actually exercised.
    out = attention_forward(decoder_hidden, encoder_outputs, w_dec, w_enc, b2d,
                            batch_tile=8)
    out = jax.block_until_ready(out)

    ref = reference_forward(decoder_hidden, encoder_outputs, w_t, b2d)
    assert out.shape == (batch, src_len)
    # bf16 MXU inputs -> slightly loosened tolerance vs the f32 reference.
    assert jnp.allclose(out, ref, atol=3e-2, rtol=1e-2), "mismatch vs reference"
    # Exact divide in the kernel: rows sum to 1 up to f32 rounding.
    assert jnp.allclose(jnp.sum(out, axis=1), 1.0, atol=1e-4), "softmax rows must sum to 1"

    print("KERNEL_OK")
</pallas_src>

<mosaic_0001>
module attributes {stable_mosaic.version = 11 : i64} {
  func.func @attention_kernel(%arg0: i32, %arg1: memref<8x32xbf16, #tpu.memory_space<vmem>>, %arg2: memref<8x8x64xbf16, #tpu.memory_space<vmem>>, %arg3: memref<32x16xbf16, #tpu.memory_space<vmem>>, %arg4: memref<64x16xbf16, #tpu.memory_space<vmem>>, %arg5: memref<1x16xf32, #tpu.memory_space<vmem>>, %arg6: memref<8x128xf32, #tpu.memory_space<vmem>>) attributes {dimension_semantics = [#tpu.dimension_semantics<parallel>], iteration_bounds = array<i64: 2>, scalar_prefetch = 0 : i64, scratch_operands = 0 : i64, tpu.core_type = #tpu.core_type<tc>, window_params = [{transform_indices = @transform_0, window_bounds = array<i64: 8, 32>}, {transform_indices = @transform_1, window_bounds = array<i64: 8, 8, 64>}, {pipeline_mode = #tpu.pipeline_mode<synchronous>, transform_indices = @transform_2, window_bounds = array<i64: 32, 16>}, {pipeline_mode = #tpu.pipeline_mode<synchronous>, transform_indices = @transform_3, window_bounds = array<i64: 64, 16>}, {pipeline_mode = #tpu.pipeline_mode<synchronous>, transform_indices = @transform_4, window_bounds = array<i64: 1, 16>}, {transform_indices = @transform_5, window_bounds = array<i64: 8, 128>}]} {
    %c0 = arith.constant 0 : index
    %c0_0 = arith.constant 0 : index
    %c0_1 = arith.constant 0 : index
    %0 = vector.load %arg2[%c0, %c0_0, %c0_1] : memref<8x8x64xbf16, #tpu.memory_space<vmem>>, vector<8x8x64xbf16>
    %1 = vector.shape_cast %0 : vector<8x8x64xbf16> to vector<64x64xbf16>
    %c0_2 = arith.constant 0 : index
    %c0_3 = arith.constant 0 : index
    %2 = vector.load %arg4[%c0_2, %c0_3] : memref<64x16xbf16, #tpu.memory_space<vmem>>, vector<64x16xbf16>
    %cst = arith.constant dense<0.000000e+00> : vector<64x16xf32>
    %3 = tpu.matmul %1, %2, %cst {dimension_numbers = #tpu.dot_dimension_numbers<[1], [0], [0], [1], [0, 0, 1, 1], [], []>} : vector<64x64xbf16>, vector<64x16xbf16>, vector<64x16xf32> -> vector<64x16xf32>
    %c0_4 = arith.constant 0 : index
    %c0_5 = arith.constant 0 : index
    %4 = vector.load %arg1[%c0_4, %c0_5] : memref<8x32xbf16, #tpu.memory_space<vmem>>, vector<8x32xbf16>
    %c0_6 = arith.constant 0 : index
    %c0_7 = arith.constant 0 : index
    %5 = vector.load %arg3[%c0_6, %c0_7] : memref<32x16xbf16, #tpu.memory_space<vmem>>, vector<32x16xbf16>
    %cst_8 = arith.constant dense<0.000000e+00> : vector<8x16xf32>
    %6 = tpu.matmul %4, %5, %cst_8 {dimension_numbers = #tpu.dot_dimension_numbers<[1], [0], [0], [1], [0, 0, 1, 1], [], []>} : vector<8x32xbf16>, vector<32x16xbf16>, vector<8x16xf32> -> vector<8x16xf32>
    %c0_9 = arith.constant 0 : index
    %c0_10 = arith.constant 0 : index
    %7 = vector.load %arg5[%c0_9, %c0_10] : memref<1x16xf32, #tpu.memory_space<vmem>>, vector<1x16xf32>
    %8 = vector.broadcast %7 : vector<1x16xf32> to vector<8x16xf32>
    %9 = arith.addf %6, %8 : vector<8x16xf32>
    %10 = vector.shape_cast %3 : vector<64x16xf32> to vector<8x8x16xf32>
    %11 = vector.shape_cast %9 : vector<8x16xf32> to vector<1x8x16xf32>
    %12 = vector.broadcast %11 : vector<1x8x16xf32> to vector<8x8x16xf32>
    %13 = arith.addf %10, %12 : vector<8x8x16xf32>
    %14 = math.tanh %13 : vector<8x8x16xf32>
    %cst_11 = arith.constant dense<0.000000e+00> : vector<8x8xf32>
    %15 = vector.multi_reduction <add>, %14, %cst_11 [2] : vector<8x8x16xf32> to vector<8x8xf32>
    %16 = tpu.transpose %15, [1, 0] : vector<8x8xf32> -> vector<8x8xf32>
    %cst_12 = arith.constant dense<0xFF800000> : vector<8xf32>
    %17 = vector.multi_reduction <maximumf>, %16, %cst_12 [1] : vector<8x8xf32> to vector<8xf32>
    %18 = vector.shape_cast %17 : vector<8xf32> to vector<8x1xf32>
    %19 = vector.broadcast %18 : vector<8x1xf32> to vector<8x8xf32>
    %20 = arith.subf %16, %19 : vector<8x8xf32>
    %21 = math.exp %20 : vector<8x8xf32>
    %cst_13 = arith.constant dense<0.000000e+00> : vector<8xf32>
    %22 = vector.multi_reduction <add>, %21, %cst_13 [1] : vector<8x8xf32> to vector<8xf32>
    %23 = vector.shape_cast %22 : vector<8xf32> to vector<8x1xf32>
    %24 = vector.broadcast %23 : vector<8x1xf32> to vector<8x8xf32>
    %25 = arith.divf %21, %24 : vector<8x8xf32>
    %cst_14 = arith.constant 0.000000e+00 : f32
    %26 = vector.broadcast %cst_14 : f32 to vector<8x120xf32>
    %27 = tpu.concatenate %25, %26 in 1 : vector<8x8xf32>, vector<8x120xf32> -> vector<8x128xf32>
    %c0_15 = arith.constant 0 : index
    %c0_16 = arith.constant 0 : index
    %28 = vector.load %arg6[%c0_15, %c0_16] : memref<8x128xf32, #tpu.memory_space<vmem>>, vector<8x128xf32>
    tpu.vector_store %arg6[%c0_15, %c0_16], %27 {strides = array<i32>} : memref<8x128xf32, #tpu.memory_space<vmem>>, vector<8x128xf32>,
    return
  }
  func.func @transform_0(%arg0: i32) -> (i32, i32) {
    %c0_i32 = arith.constant 0 : i32
    %c0_i32_0 = arith.constant 0 : i32
    return %arg0, %c0_i32 : i32, i32
  }
  func.func @transform_1(%arg0: i32) -> (i32, i32, i32) {
    %c0_i32 = arith.constant 0 : i32
    %c0_i32_0 = arith.constant 0 : i32
    %c0_i32_1 = arith.constant 0 : i32
    return %c0_i32, %arg0, %c0_i32_0 : i32, i32, i32
  }
  func.func @transform_2(%arg0: i32) -> (i32, i32) {
    %c0_i32 = arith.constant 0 : i32
    %c0_i32_0 = arith.constant 0 : i32
    %c0_i32_1 = arith.constant 0 : i32
    return %c0_i32, %c0_i32_0 : i32, i32
  }
  func.func @transform_3(%arg0: i32) -> (i32, i32) {
    %c0_i32 = arith.constant 0 : i32
    %c0_i32_0 = arith.constant 0 : i32
    %c0_i32_1 = arith.constant 0 : i32
    return %c0_i32, %c0_i32_0 : i32, i32
  }
  func.func @transform_4(%arg0: i32) -> (i32, i32) {
    %c0_i32 = arith.constant 0 : i32
    %c0_i32_0 = arith.constant 0 : i32
    %c0_i32_1 = arith.constant 0 : i32
    return %c0_i32, %c0_i32_0 : i32, i32
  }
  func.func @transform_5(%arg0: i32) -> (i32, i32) {
    %c0_i32 = arith.constant 0 : i32
    %c0_i32_0 = arith.constant 0 : i32
    return %arg0, %c0_i32 : i32, i32
  }
}

</mosaic_0001>

<llo_original>
// kernel: tpu_custom_call.1
$region0: #{tpu_custom_call.1}
  #allocation0 [shape = 'u32[]', space=smem, size = 0x4, offset = 0x4, fixed_abs, tag = 'smem constant byte address 0x4 - core index']
  #allocation1 [shape = 'u32[144,128]{1,0:T(1,128)}', space=vmem, size = 0x12000, scoped, tag = 'internal scratch']
  %s0 = inlined_call_operand.hbm [shape: bf16[16,32], index: 0, kind: input, shape index: {}]
  %s1 = inlined_call_operand.vmem [shape: bf16[8,16,64], index: 1, kind: input, shape index: {}]
  %s2 = inlined_call_operand.vmem [shape: bf16[32,16], index: 2, kind: input, shape index: {}]
  %s3 = inlined_call_operand.vmem [shape: bf16[64,16], index: 3, kind: input, shape index: {}]
  %s4 = inlined_call_operand.vmem [shape: f32[1,16], index: 4, kind: input, shape index: {}]
  %s5 = inlined_call_operand.hbm [shape: f32[16,128], index: 5, kind: output, shape index: {}]
  %s6 = sld [smem:[#allocation0]]
  $region98: #{tpu_custom_call.1} parent=0
    _
  %s8 = ssub.s32 1, %s6
  %s9 = scalar_select 0, %s8, %s6
  $region1: #{tpu_custom_call.1} parent=0
    #allocation2 [shape = 'u8[4096]{0}', space=vmem, size = 0x1000, scoped, tag = 'input window, operand 0']
    #allocation3 [shape = 's32[2]{0}', space=sflag, size = 0x8, scoped, tag = 'scoped memory for tpu_custom_call.1']
    #allocation4 [shape = 's32[2]{0}', space=sflag, size = 0x8, scoped, tag = 'scoped memory for tpu_custom_call.1']
    #allocation5 [shape = 'u8[32768]{0}', space=vmem, size = 0x8000, scoped, tag = 'input window, operand 1']
    #allocation6 [shape = 'u8[8192]{0}', space=vmem, size = 0x2000, scoped, tag = 'output window, operand 0']
    %10 = vsyncpa [#allocation3], 0
    %s11 = scalar_lea.sflag [#allocation3], 1
    %12 = vsyncpa %s11, 0
    %13 = vsyncpa [#allocation4], 0
    %s14 = scalar_lea.sflag [#allocation4], 1
    %15 = vsyncpa %s14, 0
    loop: start=0, step=1, limit=4
    $region2: #{tpu_custom_call.1} parent=1 // loop_pre_header
      _
    $region3: #{tpu_custom_call.1} parent=1 // loop_header
      %s17 = sphi 0, %s21
      %p18 = scmp.ge.s32.totalorder %s17, 4
      %s27 = sphi 0, %s29
      %s30 = sphi 0, %s27
      %s31 = sphi 0, %s30
      %s47 = sphi 0, %s31
      %s53 = sphi 0, %s55
      %s56 = sphi 0, %s53
      %s57 = sphi 0, %s56
      %s73 = sphi 0, %s57
      %s77 = sphi 0, %s77
      %s79 = sphi 0, %s77
      %s80 = sphi 0, %s79
      %s94 = sphi 0, %s80
      %s98 = sphi 0, %s98
      %s100 = sphi 0, %s98
      %s101 = sphi 0, %s100
      %s115 = sphi 0, %s101
      %s119 = sphi 0, %s119
      %s121 = sphi 0, %s119
      %s122 = sphi 0, %s121
      %s136 = sphi 0, %s122
      %s142 = sphi 0, %s144
      %s145 = sphi 0, %s142
      %s146 = sphi 0, %s145
      %s162 = sphi 0, %s146
    $region4: #{tpu_custom_call.1} parent=1 // loop_header_branch
      %20 = sbr.rel (%p18) target = $region8
    $region5: #{tpu_custom_call.1} parent=1 // loop_body
      %s22 = ssub.s32 %s17, 1
      %s23 = ssub.s32 %s17, 2
      %s24 = sadd.s32 %s17, 1
      %s25 = ssub.s32 %s17, %s24
      %p26 = scmp.eq.s32.totalorder %s25, 0
      %s28 = sadd.s32 %s27, 1
      %s29 = scalar_select %p26, %s27, %s28
      %p32 = pneg %p26
      %p33 = scmp.eq.s32.totalorder %s17, 1
      %p34 = por %p32, %p33
      %p35 = scmp.ne.s32.totalorder %s27, %s30
      %p36 = scmp.eq.s32.totalorder %s17, 0
      %p37 = por %p35, %p36
      %p38 = scmp.ne.s32.totalorder %s27, %s30
      %p39 = scmp.eq.s32.totalorder %s22, 1
      %p40 = por %p38, %p39
      %p41 = scmp.ne.s32.totalorder %s30, %s31
      %p42 = scmp.eq.s32.totalorder %s22, 0
      %p43 = por %p41, %p42
      %p44 = scmp.ne.s32.totalorder %s30, %s31
      %p45 = scmp.eq.s32.totalorder %s23, 1
      %p46 = por %p44, %p45
      %p48 = scmp.ne.s32.totalorder %s31, %s47
      %p49 = scmp.eq.s32.totalorder %s23, 0
      %p50 = por %p48, %p49
      %s51 = ssub.s32 %s17, %s24
      %p52 = scmp.eq.s32.totalorder %s51, 0
      %s54 = sadd.s32 %s53, 1
      %s55 = scalar_select %p52, %s53, %s54
      %p58 = pneg %p52
      %p59 = scmp.eq.s32.totalorder %s17, 1
      %p60 = por %p58, %p59
      %p61 = scmp.ne.s32.totalorder %s53, %s56
      %p62 = scmp.eq.s32.totalorder %s17, 0
      %p63 = por %p61, %p62
      %p64 = scmp.ne.s32.totalorder %s53, %s56
      %p65 = scmp.eq.s32.totalorder %s22, 1
      %p66 = por %p64, %p65
      %p67 = scmp.ne.s32.totalorder %s56, %s57
      %p68 = scmp.eq.s32.totalorder %s22, 0
      %p69 = por %p67, %p68
      %p70 = scmp.ne.s32.totalorder %s56, %s57
      %p71 = scmp.eq.s32.totalorder %s23, 1
      %p72 = por %p70, %p71
      %p74 = scmp.ne.s32.totalorder %s57, %s73
      %p75 = scmp.eq.s32.totalorder %s23, 0
      %p76 = por %p74, %p75
      %s78 = sadd.s32 %s77, 1
      %p81 = scmp.eq.s32.totalorder %s17, 1
      %p82 = scmp.ne.s32.totalorder %s77, %s79
      %p83 = scmp.eq.s32.totalorder %s17, 0
      %p84 = por %p82, %p83
      %p85 = scmp.ne.s32.totalorder %s77, %s79
      %p86 = scmp.eq.s32.totalorder %s22, 1
      %p87 = por %p85, %p86
      %p88 = scmp.ne.s32.totalorder %s79, %s80
      %p89 = scmp.eq.s32.totalorder %s22, 0
      %p90 = por %p88, %p89
      %p91 = scmp.ne.s32.totalorder %s79, %s80
      %p92 = scmp.eq.s32.totalorder %s23, 1
      %p93 = por %p91, %p92
      %p95 = scmp.ne.s32.totalorder %s80, %s94
      %p96 = scmp.eq.s32.totalorder %s23, 0
      %p97 = por %p95, %p96
      %s99 = sadd.s32 %s98, 1
      %p102 = scmp.eq.s32.totalorder %s17, 1
      %p103 = scmp.ne.s32.totalorder %s98, %s100
      %p104 = scmp.eq.s32.totalorder %s17, 0
      %p105 = por %p103, %p104
      %p106 = scmp.ne.s32.totalorder %s98, %s100
      %p107 = scmp.eq.s32.totalorder %s22, 1
      %p108 = por %p106, %p107
      %p109 = scmp.ne.s32.totalorder %s100, %s101
      %p110 = scmp.eq.s32.totalorder %s22, 0
      %p111 = por %p109, %p110
      %p112 = scmp.ne.s32.totalorder %s100, %s101
      %p113 = scmp.eq.s32.totalorder %s23, 1
      %p114 = por %p112, %p113
      %p116 = scmp.ne.s32.totalorder %s101, %s115
      %p117 = scmp.eq.s32.totalorder %s23, 0
      %p118 = por %p116, %p117
      %s120 = sadd.s32 %s119, 1
      %p123 = scmp.eq.s32.totalorder %s17, 1
      %p124 = scmp.ne.s32.totalorder %s119, %s121
      %p125 = scmp.eq.s32.totalorder %s17, 0
      %p126 = por %p124, %p125
      %p127 = scmp.ne.s32.totalorder %s119, %s121
      %p128 = scmp.eq.s32.totalorder %s22, 1
      %p129 = por %p127, %p128
      %p130 = scmp.ne.s32.totalorder %s121, %s122
      %p131 = scmp.eq.s32.totalorder %s22, 0
      %p132 = por %p130, %p131
      %p133 = scmp.ne.s32.totalorder %s121, %s122
      %p134 = scmp.eq.s32.totalorder %s23, 1
      %p135 = por %p133, %p134
      %p137 = scmp.ne.s32.totalorder %s122, %s136
      %p138 = scmp.eq.s32.totalorder %s23, 0
      %p139 = por %p137, %p138
      %s140 = ssub.s32 %s17, %s24
      %p141 = scmp.eq.s32.totalorder %s140, 0
      %s143 = sadd.s32 %s142, 1
      %s144 = scalar_select %p141, %s142, %s143
      %p147 = pneg %p141
      %p148 = scmp.eq.s32.totalorder %s17, 1
      %p149 = por %p147, %p148
      %p150 = scmp.ne.s32.totalorder %s142, %s145
      %p151 = scmp.eq.s32.totalorder %s17, 0
      %p152 = por %p150, %p151
      %p153 = scmp.ne.s32.totalorder %s142, %s145
      %p154 = scmp.eq.s32.totalorder %s22, 1
      %p155 = por %p153, %p154
      %p156 = scmp.ne.s32.totalorder %s145, %s146
      %p157 = scmp.eq.s32.totalorder %s22, 0
      %p158 = por %p156, %p157
      %p159 = scmp.ne.s32.totalorder %s145, %s146
      %p160 = scmp.eq.s32.totalorder %s23, 1
      %p161 = por %p159, %p160
      %p163 = scmp.ne.s32.totalorder %s146, %s162
      %p164 = scmp.eq.s32.totalorder %s23, 0
      %p165 = por %p163, %p164
      %p166 = scmp.le.s32.totalorder 1, %s17
      %p167 = scmp.lt.s32.totalorder %s17, 3
      %p168 = pnand %p166, %p167
      %p169 = pneg %p168
      // Predicated region
      $region9: #{tpu_custom_call.1} parent=5 // pred_check
        _
      $region10: #{tpu_custom_call.1} parent=5 // pred_check_branch
        %171 = sbr.rel (%p168) target = $region12
      $region11: #{tpu_custom_call.1} parent=5 // pred_region
        %s172 = ssub.s32 %s17, 1
        // Predicated region
        $region13: #{tpu_custom_call.1} parent=11 // pred_check
          %p173 = pneg %p90
        $region14: #{tpu_custom_call.1} parent=11 // pred_check_branch
          %175 = sbr.rel (%p173) target = $region16
        $region15: #{tpu_custom_call.1} parent=11 // pred_region
          _
        $region16: #{tpu_custom_call.1} parent=11 // pred_fallthru
          _
        // Predicated region
        $region17: #{tpu_custom_call.1} parent=11 // pred_check
          %p176 = pneg %p111
        $region18: #{tpu_custom_call.1} parent=11 // pred_check_branch
          %178 = sbr.rel (%p176) target = $region20
        $region19: #{tpu_custom_call.1} parent=11 // pred_region
          _
        $region20: #{tpu_custom_call.1} parent=11 // pred_fallthru
          _
        // Predicated region
        $region21: #{tpu_custom_call.1} parent=11 // pred_check
          %p179 = pneg %p132
        $region22: #{tpu_custom_call.1} parent=11 // pred_check_branch
          %181 = sbr.rel (%p179) target = $region24
        $region23: #{tpu_custom_call.1} parent=11 // pred_region
          _
        $region24: #{tpu_custom_call.1} parent=11 // pred_fallthru
          _
      $region12: #{tpu_custom_call.1} parent=5 // pred_fallthru
        _
      %p182 = scmp.lt.s32.totalorder %s17, 2
      // Predicated region
      $region25: #{tpu_custom_call.1} parent=5 // pred_check
        %p183 = pneg %p182
      $region26: #{tpu_custom_call.1} parent=5 // pred_check_branch
        %185 = sbr.rel (%p183) target = $region28
      $region27: #{tpu_custom_call.1} parent=5 // pred_region
        // Predicated region
        $region29: #{tpu_custom_call.1} parent=27 // pred_check
          %p186 = pneg %p37
        $region30: #{tpu_custom_call.1} parent=27 // pred_check_branch
          %188 = sbr.rel (%p186) target = $region32
        $region31: #{tpu_custom_call.1} parent=27 // pred_region
          %s189 = sand.u32 %s27, 1
          %s190 = scalar_lea.sflag [#allocation3], %s189
          %s191 = sand.u32 %s27, 1
          %s192 = smul.addr %s191, 4
          %s193 = scalar_lea.vmem [#allocation2], %s192
          %s195 = ssub.s32 64, 64
          %196 = vsyncadd %s190, %s195
          %s197 = smul.addr %s17, 64
          %s198 = scalar_lea.hbm %s0, %s197
          %s200 = sshll.u32 %s193, 4
          %s201 = int_to_ptr.vmem [resolvable:$true] %s200
          %203 = dma.hbm_to_vmem [thread:$0]  %s198, 64, %s201, %s190
        $region32: #{tpu_custom_call.1} parent=27 // pred_fallthru
          _
        // Predicated region
        $region33: #{tpu_custom_call.1} parent=27 // pred_check
          %p204 = pneg %p63
        $region34: #{tpu_custom_call.1} parent=27 // pred_check_branch
          %206 = sbr.rel (%p204) target = $region36
        $region35: #{tpu_custom_call.1} parent=27 // pred_region
          %s207 = sand.u32 %s53, 1
          %s208 = sand.u32 %s53, 1
          %s209 = smul.addr %s208, 32
          %s210 = scalar_lea.vmem [#allocation5], %s209
          %s211 = smul.addr %s17, 4
          %s212 = scalar_lea.vmem %s1, %s211
          // Predicated region
          $region37: #{tpu_custom_call.1} parent=35 // pred_check
            _
          $region38: #{tpu_custom_call.1} parent=35 // pred_check_branch
            %214 = sbr.rel (0) target = $region40
          $region39: #{tpu_custom_call.1} parent=35 // pred_region
            // Predicated region
            $region41: #{tpu_custom_call.1} parent=39 // pred_check
              _
            $region42: #{tpu_custom_call.1} parent=39 // pred_check_branch
              %216 = sbr.rel target = $region44
            $region43: #{tpu_custom_call.1} parent=39 // pred_region
              // Predicated region
              $region56: #{tpu_custom_call.1} parent=43 // pred_check
                _
              $region57: #{tpu_custom_call.1} parent=43 // pred_check_branch
                %246 = sbr.rel (0) target = $region59
              $region58: #{tpu_custom_call.1} parent=43 // pred_region
                loop: start=0, step=1, limit=1
                $region60: #{tpu_custom_call.1} parent=58 // loop_pre_header
                  _
                $region61: #{tpu_custom_call.1} parent=58 // loop_header
                  %s248 = sphi 0, %s252
                  %p249 = scmp.ge.s32.totalorder %s248, 1
                  %s253 = sphi %s212, %s212
                  %s254 = sphi %s210, %s210
                $region62: #{tpu_custom_call.1} parent=58 // loop_header_branch
                  %251 = sbr.rel (%p249) target = $region66
                $region63: #{tpu_custom_call.1} parent=58 // loop_body
                  _
                $region64: #{tpu_custom_call.1} parent=58 // loop_footer
                  %s252 = sadd.s32 1, %s248
                $region65: #{tpu_custom_call.1} parent=58 // loop_footer_branch
                  %247 = sbr.rel target = $region61
                $region66: #{tpu_custom_call.1} parent=58 // loop_exit
                  _
                %s256 = ssub.s32 16, 1
                loop: start=0, step=1, limit=1
                $region67: #{tpu_custom_call.1} parent=58 // loop_pre_header
                  _
                $region68: #{tpu_custom_call.1} parent=58 // loop_header
                  %s258 = sphi 0, %s262
                  %p259 = scmp.ge.s32.totalorder %s258, 1
                  %s263 = sphi %s212, %s212
                  %s264 = sphi %s210, %s210
                $region69: #{tpu_custom_call.1} parent=58 // loop_header_branch
                  %261 = sbr.rel (%p259) target = $region73
                $region70: #{tpu_custom_call.1} parent=58 // loop_body
                  %v265 = vld [vmem:[%s263] sm:%s256]
                  %266 = vst [vmem:[%s264] sm:%s256] %v265
                  %v267 = vld [vmem:[%s263 + $0x8] sm:%s256]
                  %268 = vst [vmem:[%s264 + $0x4] sm:%s256] %v267
                  %v269 = vld [vmem:[%s263 + $0x10] sm:%s256]
                  %270 = vst [vmem:[%s264 + $0x8] sm:%s256] %v269
                  %v271 = vld [vmem:[%s263 + $0x18] sm:%s256]
                  %272 = vst [vmem:[%s264 + $0xc] sm:%s256] %v271
                  %v273 = vld [vmem:[%s263 + $0x20] sm:%s256]
                  %274 = vst [vmem:[%s264 + $0x10] sm:%s256] %v273
                  %v275 = vld [vmem:[%s263 + $0x28] sm:%s256]
                  %276 = vst [vmem:[%s264 + $0x14] sm:%s256] %v275
                  %v277 = vld [vmem:[%s263 + $0x30] sm:%s256]
                  %278 = vst [vmem:[%s264 + $0x18] sm:%s256] %v277
                  %v279 = vld [vmem:[%s263 + $0x38] sm:%s256]
                  %280 = vst [vmem:[%s264 + $0x1c] sm:%s256] %v279
                $region71: #{tpu_custom_call.1} parent=58 // loop_footer
                  %s262 = sadd.s32 1, %s258
                $region72: #{tpu_custom_call.1} parent=58 // loop_footer_branch
                  %257 = sbr.rel target = $region68
                $region73: #{tpu_custom_call.1} parent=58 // loop_exit
                  _
              $region59: #{tpu_custom_call.1} parent=43 // pred_fallthru
                _
            $region44: #{tpu_custom_call.1} parent=39 // pred_fallthru
              _
            // Predicated region
            $region45: #{tpu_custom_call.1} parent=39 // pred_check
              _
            $region46: #{tpu_custom_call.1} parent=39 // pred_check_branch
              %218 = sbr.rel (0) target = $region48
            $region47: #{tpu_custom_call.1} parent=39 // pred_region
              %s220 = ssub.s32 16, 1
              loop: start=0, step=1, limit=1
              $region49: #{tpu_custom_call.1} parent=47 // loop_pre_header
                _
              $region50: #{tpu_custom_call.1} parent=47 // loop_header
                %s222 = sphi 0, %s226
                %p223 = scmp.ge.s32.totalorder %s222, 1
                %s227 = sphi %s212, %s212
                %s228 = sphi %s210, %s210
              $region51: #{tpu_custom_call.1} parent=47 // loop_header_branch
                %225 = sbr.rel (%p223) target = $region55
              $region52: #{tpu_custom_call.1} parent=47 // loop_body
                %v229 = vld [vmem:[%s227] sm:%s220]
                %230 = vst [vmem:[%s228] sm:%s220] %v229
                %v231 = vld [vmem:[%s227 + $0x8] sm:%s220]
                %232 = vst [vmem:[%s228 + $0x4] sm:%s220] %v231
                %v233 = vld [vmem:[%s227 + $0x10] sm:%s220]
                %234 = vst [vmem:[%s228 + $0x8] sm:%s220] %v233
                %v235 = vld [vmem:[%s227 + $0x18] sm:%s220]
                %236 = vst [vmem:[%s228 + $0xc] sm:%s220] %v235
                %v237 = vld [vmem:[%s227 + $0x20] sm:%s220]
                %238 = vst [vmem:[%s228 + $0x10] sm:%s220] %v237
                %v239 = vld [vmem:[%s227 + $0x28] sm:%s220]
                %240 = vst [vmem:[%s228 + $0x14] sm:%s220] %v239
                %v241 = vld [vmem:[%s227 + $0x30] sm:%s220]
                %242 = vst [vmem:[%s228 + $0x18] sm:%s220] %v241
                %v243 = vld [vmem:[%s227 + $0x38] sm:%s220]
                %244 = vst [vmem:[%s228 + $0x1c] sm:%s220] %v243
              $region53: #{tpu_custom_call.1} parent=47 // loop_footer
                %s226 = sadd.s32 1, %s222
              $region54: #{tpu_custom_call.1} parent=47 // loop_footer_branch
                %221 = sbr.rel target = $region50
              $region55: #{tpu_custom_call.1} parent=47 // loop_exit
                _
            $region48: #{tpu_custom_call.1} parent=39 // pred_fallthru
              _
          $region40: #{tpu_custom_call.1} parent=35 // pred_fallthru
            _
          %281 = vnop
        $region36: #{tpu_custom_call.1} parent=27 // pred_fallthru
          _
      $region28: #{tpu_custom_call.1} parent=5 // pred_fallthru
        _
      %p282 = scmp.le.s32.totalorder 1, %s17
      %p283 = scmp.lt.s32.totalorder %s17, 3
      %p284 = pnand %p282, %p283
      %p285 = pneg %p284
      // Predicated region
      $region74: #{tpu_custom_call.1} parent=5 // pred_check
        _
      $region75: #{tpu_custom_call.1} parent=5 // pred_check_branch
        %287 = sbr.rel (%p284) target = $region77
      $region76: #{tpu_custom_call.1} parent=5 // pred_region
        %s288 = ssub.s32 %s17, 1
        %s289 = sand.u32 %s30, 1
        %s290 = scalar_lea.sflag [#allocation3], %s289
        %s291 = sand.u32 %s30, 1
        %s292 = smul.addr %s291, 4
        %s293 = scalar_lea.vmem [#allocation2], %s292
        // Predicated region
        $region78: #{tpu_custom_call.1} parent=76 // pred_check
          %p294 = pneg %p43
        $region79: #{tpu_custom_call.1} parent=76 // pred_check_branch
          %296 = sbr.rel (%p294) target = $region81
        $region80: #{tpu_custom_call.1} parent=76 // pred_region
          %297 = dma.done %s290, 64
        $region81: #{tpu_custom_call.1} parent=76 // pred_fallthru
          _
        %s298 = sand.u32 %s56, 1
        %s299 = sand.u32 %s56, 1
        %s300 = smul.addr %s299, 32
        %s301 = scalar_lea.vmem [#allocation5], %s300
        // Predicated region
        $region82: #{tpu_custom_call.1} parent=76 // pred_check
          %p302 = pneg %p69
        $region83: #{tpu_custom_call.1} parent=76 // pred_check_branch
          %304 = sbr.rel (%p302) target = $region85
        $region84: #{tpu_custom_call.1} parent=76 // pred_region
          _
        $region85: #{tpu_custom_call.1} parent=76 // pred_fallthru
          _
        %s305 = sand.u32 %s30, 1
        %s306 = scalar_lea.sflag [#allocation3], %s305
        %s307 = sand.u32 %s30, 1
        %s308 = smul.addr %s307, 4
        %s309 = scalar_lea.vmem [#allocation2], %s308
        %p310 = pneg %p43
        %p311 = pneg %p40
        %s312 = sand.u32 %s56, 1
        %s313 = sand.u32 %s56, 1
        %s314 = smul.addr %s313, 32
        %s315 = scalar_lea.vmem [#allocation5], %s314
        %p316 = pneg %p69
        %p317 = pneg %p66
        %p318 = pneg %p90
        %p319 = pneg %p87
        %p320 = pneg %p111
        %p321 = pneg %p108
        %p322 = pneg %p132
        %p323 = pneg %p129
        %p324 = pneg %p158
        %p325 = pneg %p155
        %s326 = sand.u32 %s145, 1
        %s327 = scalar_lea.sflag [#allocation4], %s326
        %s328 = sand.u32 %s145, 1
        %s329 = smul.addr %s328, 8
        %s330 = scalar_lea.vmem [#allocation6], %s329
        %v332 = vld [vmem:[%s301] sm:$0xf]
        %v333 = vld [vmem:[%s301 + $0x4] sm:$0xf]
        %v334 = vld [vmem:[%s301 + $0x8] sm:$0xf]
        %v335 = vld [vmem:[%s301 + $0xc] sm:$0xf]
        %v336 = vld [vmem:[%s301 + $0x10] sm:$0xf]
        %v337 = vld [vmem:[%s301 + $0x14] sm:$0xf]
        %v338 = vld [vmem:[%s301 + $0x18] sm:$0xf]
        %v339 = vld [vmem:[%s301 + $0x1c] sm:$0xf]
        %v340 = vld [vmem:[%s3] sm:$0xf]
        %v341 = vld [vmem:[%s3 + $0x4] sm:$0xf]
        %v342 = vld [vmem:[%s3 + $0x8] sm:$0xf]
        %v343 = vld [vmem:[%s3 + $0xc] sm:$0xf]
        %v344 = vld [vmem:[%s3 + $0x10] sm:$0xf]
        %v345 = vld [vmem:[%s3 + $0x14] sm:$0xf]
        %v346 = vld [vmem:[%s3 + $0x18] sm:$0xf]
        %v347 = vld [vmem:[%s3 + $0x1c] sm:$0xf]
        %v356 = vunpack.c.l.b16 %v332
        %v357 = vunpack.c.l.b16 %v333
        %v358 = vunpack.c.l.b16 %v334
        %v359 = vunpack.c.l.b16 %v335
        %v360 = vunpack.c.l.b16 %v336
        %v361 = vunpack.c.l.b16 %v337
        %v362 = vunpack.c.l.b16 %v338
        %v363 = vunpack.c.l.b16 %v339
        %v364 = vpack.c.b16 %v357, %v356
        %v365 = vpack.c.b16 %v359, %v358
        %v366 = vpack.c.b16 %v361, %v360
        %v367 = vpack.c.b16 %v363, %v362
        %v376 = vunpack.c.l.b16 %v340
        %v377 = vunpack.c.l.b16 %v341
        %v378 = vunpack.c.l.b16 %v342
        %v379 = vunpack.c.l.b16 %v343
        %v380 = vunpack.c.l.b16 %v344
        %v381 = vunpack.c.l.b16 %v345
        %v382 = vunpack.c.l.b16 %v346
        %v383 = vunpack.c.l.b16 %v347
        %v384 = vpack.c.b16 %v377, %v376
        %v385 = vpack.c.b16 %v379, %v378
        %v386 = vpack.c.b16 %v381, %v380
        %v387 = vpack.c.b16 %v383, %v382
        %vm392 = vcmask 523264
        %v394 = vsel %vm392, %v364, 0
        %v397 = vsel %vm392, %v365, 0
        %v400 = vsel %vm392, %v366, 0
        %v403 = vsel %vm392, %v367, 0
        %405 = vmatprep.subr.bf16.mxu0 0
        %406 = vmatpush1.bf16.msra.mxu0 0
        %407 = vmatprep.subr.bf16.mxu0 0
        %408 = vmatpush1.bf16.msra.mxu0 0
        %409 = vmatprep.subr.bf16.mxu0 0
        %410 = vmatpush1.bf16.msra.mxu0 0
        %411 = vmatprep.subr.bf16.mxu0 0
        %412 = vmatpush1.bf16.msra.mxu0 0
        %413 = vmatprep.subr.bf16.mxu0 0
        %414 = vmatpush1.bf16.msra.mxu0 %v387
        %415 = vmatprep.subr.bf16.mxu0 0
        %416 = vmatpush1.bf16.msra.mxu0 %v386
        %417 = vmatprep.subr.bf16.mxu0 0
        %418 = vmatpush1.bf16.msra.mxu0 %v385
        %419 = vmatprep.subr.bf16.mxu0 0
        %420 = vmatpush1.bf16.msra.mxu0 %v384
        %421 = vmatprep.subr.bf16.mxu0 0
        %422 = vmatpush2.bf16.msra.mxu0 0
        %423 = vmatprep.subr.bf16.mxu0 0
        %424 = vmatpush2.bf16.msra.mxu0 0
        %425 = vmatprep.subr.bf16.mxu0 0
        %426 = vmatpush2.bf16.msra.mxu0 0
        %427 = vmatprep.subr.bf16.mxu0 0
        %428 = vmatpush2.bf16.msra.mxu0 0
        %429 = vmatprep.subr.bf16.mxu0 0
        %430 = vmatpush2.bf16.msra.mxu0 0
        %431 = vmatprep.subr.bf16.mxu0 0
        %432 = vmatpush2.bf16.msra.mxu0 0
        %433 = vmatprep.subr.bf16.mxu0 0
        %434 = vmatpush2.bf16.msra.mxu0 0
        %435 = vmatprep.subr.bf16.mxu0 0
        %436 = vmatpush2.bf16.msra.mxu0 0
        %437 = vmatprep.mubr.bf16.mxu0 0
        %438 = vmatmul.mubr.bf16.gmra.mxu0 %v394
        %v439 = vpop.f32.mrf.mxu0
        %v440 = vadd.f32 0.0, %v439
        %v441 = vpop.f32.mrf.mxu0
        %v442 = vpop.f32.mrf.mxu0
        %v443 = vadd.f32 0.0, %v442
        %v444 = vpop.f32.mrf.mxu0
        %445 = vmatprep.mubr.bf16.mxu0 0
        %446 = vmatmul.mubr.bf16.gmra.mxu0 %v397
        %v447 = vpop.f32.mrf.mxu0
        %v448 = vadd.f32 0.0, %v447
        %v449 = vpop.f32.mrf.mxu0
        %v450 = vpop.f32.mrf.mxu0
        %v451 = vadd.f32 0.0, %v450
        %v452 = vpop.f32.mrf.mxu0
        %453 = vmatprep.mubr.bf16.mxu0 0
        %454 = vmatmul.mubr.bf16.gmra.mxu0 %v400
        %v455 = vpop.f32.mrf.mxu0
        %v456 = vadd.f32 0.0, %v455
        %v457 = vpop.f32.mrf.mxu0
        %v458 = vpop.f32.mrf.mxu0
        %v459 = vadd.f32 0.0, %v458
        %v460 = vpop.f32.mrf.mxu0
        %461 = vmatprep.mubr.bf16.mxu0 0
        %462 = vmatmul.mubr.bf16.gmra.mxu0 %v403
        %v463 = vpop.f32.mrf.mxu0
        %v464 = vadd.f32 0.0, %v463
        %v465 = vpop.f32.mrf.mxu0
        %v466 = vpop.f32.mrf.mxu0
        %v467 = vadd.f32 0.0, %v466
        %v468 = vpop.f32.mrf.mxu0
        %469 = vdwg.mxu0
        %v470 = vld [vmem:[%s293] sm:$0xf]
        %v471 = vld [vmem:[%s2] sm:$0xf]
        %v472 = vld [vmem:[%s2 + $0x4] sm:$0xf]
        %v473 = vld [vmem:[%s2 + $0x8] sm:$0xf]
        %v474 = vld [vmem:[%s2 + $0xc] sm:$0xf]
        %v475 = vld [vmem:[%s4] sm:$0x1]
        %v477 = vlaneseq
        %v478 = vshrl.u32 %v477, 7
        %v479 = vsub.s32 0, %v478
        %v480 = vrot.slane %v475, %v479
        %v486 = vunpack.c.l.b16 %v471
        %v487 = vunpack.c.l.b16 %v472
        %v488 = vunpack.c.l.b16 %v473
        %v489 = vunpack.c.l.b16 %v474
        %v490 = vpack.c.b16 %v487, %v486
        %v491 = vpack.c.b16 %v489, %v488
        %vm494 = vcmask 261120
        %v496 = vsel %vm494, %v470, 0
        %498 = vmatprep.subr.bf16.mxu0 0
        %499 = vmatpush1.bf16.msra.mxu0 0
        %500 = vmatprep.subr.bf16.mxu0 0
        %501 = vmatpush1.bf16.msra.mxu0 0
        %502 = vmatprep.subr.bf16.mxu0 0
        %503 = vmatpush1.bf16.msra.mxu0 0
        %504 = vmatprep.subr.bf16.mxu0 0
        %505 = vmatpush1.bf16.msra.mxu0 0
        %506 = vmatprep.subr.bf16.mxu0 0
        %507 = vmatpush1.bf16.msra.mxu0 0
        %508 = vmatprep.subr.bf16.mxu0 0
        %509 = vmatpush1.bf16.msra.mxu0 0
        %510 = vmatprep.subr.bf16.mxu0 0
        %511 = vmatpush1.bf16.msra.mxu0 %v491
        %512 = vmatprep.subr.bf16.mxu0 0
        %513 = vmatpush1.bf16.msra.mxu0 %v490
        %514 = vmatprep.subr.bf16.mxu0 0
        %515 = vmatpush2.bf16.msra.mxu0 0
        %516 = vmatprep.subr.bf16.mxu0 0
        %517 = vmatpush2.bf16.msra.mxu0 0
        %518 = vmatprep.subr.bf16.mxu0 0
        %519 = vmatpush2.bf16.msra.mxu0 0
        %520 = vmatprep.subr.bf16.mxu0 0
        %521 = vmatpush2.bf16.msra.mxu0 0
        %522 = vmatprep.subr.bf16.mxu0 0
        %523 = vmatpush2.bf16.msra.mxu0 0
        %524 = vmatprep.subr.bf16.mxu0 0
        %525 = vmatpush2.bf16.msra.mxu0 0
        %526 = vmatprep.subr.bf16.mxu0 0
        %527 = vmatpush2.bf16.msra.mxu0 0
        %528 = vmatprep.subr.bf16.mxu0 0
        %529 = vmatpush2.bf16.msra.mxu0 0
        %530 = vmatprep.mubr.bf16.mxu0 0
        %531 = vmatmul.mubr.bf16.gmra.mxu0 %v496
        %v532 = vpop.f32.mrf.mxu0
        %v533 = vadd.f32 %v480, %v532
        %v534 = vpop.f32.mrf.mxu0
        %v535 = vpop.f32.mrf.mxu0
        %v536 = vpop.f32.mrf.mxu0
        %537 = vdwg.mxu0
        %v538 = vadd.f32 %v440, %v533
        %v539 = vadd.f32 %v443, %v533
        %v540 = vadd.f32 %v448, %v533
        %v541 = vadd.f32 %v451, %v533
        %v542 = vadd.f32 %v456, %v533
        %v543 = vadd.f32 %v459, %v533
        %v544 = vadd.f32 %v464, %v533
        %v545 = vadd.f32 %v467, %v533
        %v546 = vtanh.pop %v538
        %v547 = vtanh.pop %v539
        %v548 = vtanh.pop %v540
        %v549 = vtanh.pop %v541
        %v550 = vtanh.pop %v542
        %v551 = vtanh.pop %v543
        %v552 = vtanh.pop %v544
        %v553 = vtanh.pop %v545
        %vm554 = vcmask 130048
        %v555 = vsel %vm554, %v546, 0.0
        %556 = vadd.xlane.f32.xlu0 %v555
        %v557 = vpop.xlane.xlu0 %556
        %v558 = vsel %vm554, %v547, 0.0
        %559 = vadd.xlane.f32.xlu0 %v558
        %v560 = vpop.xlane.xlu0 %559
        %v561 = vsel %vm554, %v548, 0.0
        %562 = vadd.xlane.f32.xlu0 %v561
        %v563 = vpop.xlane.xlu0 %562
        %v564 = vsel %vm554, %v549, 0.0
        %565 = vadd.xlane.f32.xlu0 %v564
        %v566 = vpop.xlane.xlu0 %565
        %v567 = vsel %vm554, %v550, 0.0
        %568 = vadd.xlane.f32.xlu0 %v567
        %v569 = vpop.xlane.xlu0 %568
        %v570 = vsel %vm554, %v551, 0.0
        %571 = vadd.xlane.f32.xlu0 %v570
        %v572 = vpop.xlane.xlu0 %571
        %v573 = vsel %vm554, %v552, 0.0
        %574 = vadd.xlane.f32.xlu0 %v573
        %v575 = vpop.xlane.xlu0 %574
        %v576 = vsel %vm554, %v553, 0.0
        %577 = vadd.xlane.f32.xlu0 %v576
        %v578 = vpop.xlane.xlu0 %577
        %v587 = vlaneseq
        %v588 = vand.u32 %v587, 127
        %v589 = vlaneseq
        %v590 = vshrl.u32 %v589, 7
        %v591 = vsub.s32 %v588, %v590
        %v592 = vrot.slane %v557, %v591
        %v593 = vlaneseq
        %v594 = vshrl.u32 %v593, 7
        %v595 = vsub.s32 %v588, %v594
        %v596 = vrot.slane %v560, %v595
        %v597 = vlaneseq
        %v598 = vshrl.u32 %v597, 7
        %v599 = vsub.s32 %v588, %v598
        %v600 = vrot.slane %v563, %v599
        %v601 = vlaneseq
        %v602 = vshrl.u32 %v601, 7
        %v603 = vsub.s32 %v588, %v602
        %v604 = vrot.slane %v566, %v603
        %v605 = vlaneseq
        %v606 = vshrl.u32 %v605, 7
        %v607 = vsub.s32 %v588, %v606
        %v608 = vrot.slane %v569, %v607
        %v609 = vlaneseq
        %v610 = vshrl.u32 %v609, 7
        %v611 = vsub.s32 %v588, %v610
        %v612 = vrot.slane %v572, %v611
        %v613 = vlaneseq
        %v614 = vshrl.u32 %v613, 7
        %v615 = vsub.s32 %v588, %v614
        %v616 = vrot.slane %v575, %v615
        %v617 = vlaneseq
        %v618 = vshrl.u32 %v617, 7
        %v619 = vsub.s32 %v588, %v618
        %v620 = vrot.slane %v578, %v619
        %vm621 = vcmask 1041409
        %v622 = vsel %vm621, %v596, %v592
        %vm623 = vcmask 1042434
        %v624 = vsel %vm623, %v600, %v622
        %vm625 = vcmask 1043459
        %v626 = vsel %vm625, %v604, %v624
        %vm627 = vcmask 1044484
        %v628 = vsel %vm627, %v608, %v626
        %vm629 = vcmask 1045509
        %v630 = vsel %vm629, %v612, %v628
        %vm631 = vcmask 1046534
        %v632 = vsel %vm631, %v616, %v630
        %vm633 = vcmask 1047559
        %v634 = vsel %vm633, %v620, %v632
        %636 = vxpose.xlu0.b32.start [1/16] %v634, 128
        %637 = vxpose.xlu0.b32.cont [2/16] 0.0, 128
        %638 = vxpose.xlu0.b32.cont [3/16] 0.0, 128
        %639 = vxpose.xlu0.b32.cont [4/16] 0.0, 128
        %640 = vxpose.xlu0.b32.cont [5/16] 0.0, 128
        %641 = vxpose.xlu0.b32.cont [6/16] 0.0, 128
        %642 = vxpose.xlu0.b32.cont [7/16] 0.0, 128
        %643 = vxpose.xlu0.b32.cont [8/16] 0.0, 128
        %644 = vxpose.xlu0.b32.cont [9/16] 0.0, 128
        %645 = vxpose.xlu0.b32.cont [10/16] 0.0, 128
        %646 = vxpose.xlu0.b32.cont [11/16] 0.0, 128
        %647 = vxpose.xlu0.b32.cont [12/16] 0.0, 128
        %648 = vxpose.xlu0.b32.cont [13/16] 0.0, 128
        %649 = vxpose.xlu0.b32.cont [14/16] 0.0, 128
        %650 = vxpose.xlu0.b32.cont [15/16] 0.0, 128
        %651 = vxpose.xlu0.b32.end [16/16] 0.0, 128
        %v652 = vpop.trf.xlu0
        %v653 = vpop.trf.xlu0
        %v654 = vpop.trf.xlu0
        %v655 = vpop.trf.xlu0
        %v656 = vpop.trf.xlu0
        %v657 = vpop.trf.xlu0
        %v658 = vpop.trf.xlu0
        %v659 = vpop.trf.xlu0
        %v660 = vpop.trf.xlu0
        %v661 = vpop.trf.xlu0
        %v662 = vpop.trf.xlu0
        %v663 = vpop.trf.xlu0
        %v664 = vpop.trf.xlu0
        %v665 = vpop.trf.xlu0
        %v666 = vpop.trf.xlu0
        %v667 = vpop.trf.xlu0
        %vm668 = vcmask 64512
        %v669 = vsel %vm668, %v652, -inf
        %670 = vmax.xlane.f32.xlu0 %v669
        %v671 = vpop.xlane.xlu0 %670
        %v672 = vsub.f32 %v652, %v671
        %v673 = vmul.f32 %v672, 1.442695
        %v674 = vpow.pop %v673
        %v675 = vsel %vm668, %v674, 0.0
        %676 = vadd.xlane.f32.xlu0 %v675
        %v677 = vpop.xlane.xlu0 %676
        %v678 = vrcp.pop %v677
        %v679 = vmul.f32 %v674, %v678
        %v680 = vsel %vm668, %v679, 0.0
        %681 = vst [vmem:[%s330] sm:$0xff] %v680
        %s682 = sand.u32 %s145, 1
        %s683 = scalar_lea.sflag [#allocation4], %s682
        %s684 = sand.u32 %s145, 1
        %s685 = smul.addr %s684, 8
        %s686 = scalar_lea.vmem [#allocation6], %s685
        // Predicated region
        $region86: #{tpu_custom_call.1} parent=76 // pred_check
          %p687 = pneg %p155
        $region87: #{tpu_custom_call.1} parent=76 // pred_check_branch
          %689 = sbr.rel (%p687) target = $region89
        $region88: #{tpu_custom_call.1} parent=76 // pred_region
          %s691 = ssub.s32 128, 128
          %692 = vsyncadd %s683, %s691
          %s693 = smul.addr %s22, 128
          %s694 = scalar_lea.hbm %s5, %s693
          %s696 = sshll.u32 %s686, 4
          %s697 = int_to_ptr.vmem [resolvable:$true] %s696
          %699 = dma.vmem_to_hbm [thread:$0]  %s697, 128, %s694, %s683
        $region89: #{tpu_custom_call.1} parent=76 // pred_fallthru
          _
      $region77: #{tpu_custom_call.1} parent=5 // pred_fallthru
        _
      %p700 = scmp.le.s32.totalorder 2, %s17
      // Predicated region
      $region90: #{tpu_custom_call.1} parent=5 // pred_check
        %p701 = pneg %p700
      $region91: #{tpu_custom_call.1} parent=5 // pred_check_branch
        %703 = sbr.rel (%p701) target = $region93
      $region92: #{tpu_custom_call.1} parent=5 // pred_region
        %s704 = ssub.s32 %s17, 2
        // Predicated region
        $region94: #{tpu_custom_call.1} parent=92 // pred_check
          %p705 = pneg %p161
        $region95: #{tpu_custom_call.1} parent=92 // pred_check_branch
          %707 = sbr.rel (%p705) target = $region97
        $region96: #{tpu_custom_call.1} parent=92 // pred_region
          %s708 = sand.u32 %s146, 1
          %s709 = scalar_lea.sflag [#allocation4], %s708
          %s710 = sand.u32 %s146, 1
          %s711 = smul.addr %s710, 8
          %s712 = scalar_lea.vmem [#allocation6], %s711
          %713 = dma.done %s709, 128
        $region97: #{tpu_custom_call.1} parent=92 // pred_fallthru
          _
      $region93: #{tpu_custom_call.1} parent=5 // pred_fallthru
        _
    $region6: #{tpu_custom_call.1} parent=1 // loop_footer
      %s21 = sadd.s32 1, %s17
    $region7: #{tpu_custom_call.1} parent=1 // loop_footer_branch
      %16 = sbr.rel target = $region3
    $region8: #{tpu_custom_call.1} parent=1 // loop_exit
      _
    %714 = vsyncpa [#allocation3], 1
    %s715 = scalar_lea.sflag [#allocation3], 1
    %716 = vsyncpa %s715, 1
    %717 = vsyncpa [#allocation4], 1
    %s718 = scalar_lea.sflag [#allocation4], 1
    %719 = vsyncpa %s718, 1

</llo_original>
